<compile_context>
chip_gen: v7x
topology: tpu7x:2x2x1
jax: 0.10.0
libtpu: 0.0.40
codegen_flags: <defaults>
</compile_context>

<pallas_src>
import jax
import jax.numpy as jnp
from jax.experimental import pallas as pl
from jax.experimental.pallas import tpu as pltpu


def mlp_kernel(x_ref, w1_ref, b1_ref, w2_ref, b2_ref, o_ref):
    # x : (5, TB)  -- batch on lanes
    # w1: (5, 5)   -- PyTorch (out_features, in_features) layout
    # b1: (5, 1), w2: (5, 1), b2: (1, 1)
    # o : (1, TB)  -- lane-dense output
    x = x_ref[...]
    w1 = w1_ref[...]

    # first_layer: K=5 contraction as 5 broadcast-FMA steps on the VPU,
    # keeping (5, TB)-shaped vregs busy instead of pushing a 5x5 matmul
    # through the MXU.
    h = w1[:, 0:1] * x[0:1, :]
    for k in range(1, 5):
        h = h + w1[:, k:k + 1] * x[k:k + 1, :]
    h = jnp.maximum(h + b1_ref[...], 0.0)               # ReLU, (5, TB)

    # out_layer: weighted sublane reduction -> lane-dense (1, TB).
    o = jnp.sum(h * w2_ref[...], axis=0, keepdims=True) + b2_ref[...]
    o_ref[...] = o.astype(o_ref.dtype)


def net_forward(x, w1, b1, w2, b2, *, block_batch=8192):
    """Forward pass of Net.

    Args:
      x:  (B, 5) float32  (PyTorch nn.Linear input convention)
      w1: (5, 5) PyTorch-layout weight (out_features, in_features)
      b1: (5,)   bias
      w2: (1, 5) PyTorch-layout weight
      b2: (1,)   bias
      block_batch: batch rows (lanes) per grid step; multiple of 128.
    Returns:
      (B, 1) float32
    """
    B = x.shape[0]

    # Layout plumbing only (no compute hoisted): batch goes to the lane axis;
    # weights keep PyTorch layout; bias/w2 reshapes are metadata-only.
    x_t = x.T                        # (5, B)
    b1_col = b1.reshape(5, 1)
    w2_col = w2.reshape(5, 1)        # (1, 5) -> (5, 1)
    b2_col = b2.reshape(1, 1)

    if B <= block_batch:
        tb = B                       # single block; last dim == full array dim
    else:
        tb = block_batch             # multiple of 128; ragged last tile masked
    grid = (pl.cdiv(B, tb),)

    out = pl.pallas_call(
        mlp_kernel,
        out_shape=jax.ShapeDtypeStruct((1, B), jnp.float32),
        grid=grid,
        in_specs=[
            pl.BlockSpec((5, tb), lambda i: (0, i)),   # x tile, batch on lanes
            pl.BlockSpec((5, 5), lambda i: (0, 0)),    # w1: VMEM-resident
            pl.BlockSpec((5, 1), lambda i: (0, 0)),    # b1: VMEM-resident
            pl.BlockSpec((5, 1), lambda i: (0, 0)),    # w2: VMEM-resident
            pl.BlockSpec((1, 1), lambda i: (0, 0)),    # b2: VMEM-resident
        ],
        out_specs=pl.BlockSpec((1, tb), lambda i: (0, i)),
        compiler_params=pltpu.CompilerParams(
            dimension_semantics=("parallel",),         # megacore-shard batch (v7x)
        ),
    )(x_t, w1, b1_col, w2_col, b2_col)

    return out.reshape(B, 1)


def _ref_forward(x, w1, b1, w2, b2):
    return jnp.maximum(x @ w1.T + b1, 0.0) @ w2.T + b2


def init_params(key):
    """Deterministic init mimicking nn.Linear default (U(-1/sqrt(fan_in), +))."""
    k1, k2, k3, k4 = jax.random.split(key, 4)
    bound = 1.0 / jnp.sqrt(5.0)      # fan_in = 5 for both layers
    w1 = jax.random.uniform(k1, (5, 5), jnp.float32, -bound, bound)
    b1 = jax.random.uniform(k2, (5,), jnp.float32, -bound, bound)
    w2 = jax.random.uniform(k3, (1, 5), jnp.float32, -bound, bound)
    b2 = jax.random.uniform(k4, (1,), jnp.float32, -bound, bound)
    return w1, b1, w2, b2


# TODO(synk): fit()/SGD/MSELoss training step is not implemented -- only the
# forward pass has a Pallas equivalent here.

if __name__ == "__main__":
    key = jax.random.PRNGKey(0)
    k_in, k_params = jax.random.split(key)
    w1, b1, w2, b2 = init_params(k_params)

    ok = True
    # (batch, per-step batch tile): tiny single block, multi-step grid with
    # resident weights, and a ragged (masked) last tile.
    for B, tb in [(8, 8192), (384, 128), (200, 128)]:
        x = jax.random.normal(jax.random.fold_in(k_in, B), (B, 5), jnp.float32)
        out = net_forward(x, w1, b1, w2, b2, block_batch=tb)
        out = jax.block_until_ready(out)
        ref = _ref_forward(x, w1, b1, w2, b2)
        assert out.shape == (B, 1)
        ok &= bool(jnp.allclose(out, ref, atol=1e-5, rtol=1e-5))

    if ok:
        print("KERNEL_OK")
</pallas_src>

<mosaic_0001>
module attributes {stable_mosaic.version = 11 : i64} {
  func.func @mlp_kernel(%arg0: i32, %arg1: memref<5x8xf32, #tpu.memory_space<vmem>>, %arg2: memref<5x5xf32, #tpu.memory_space<vmem>>, %arg3: memref<5x1xf32, #tpu.memory_space<vmem>>, %arg4: memref<5x1xf32, #tpu.memory_space<vmem>>, %arg5: memref<1x1xf32, #tpu.memory_space<vmem>>, %arg6: memref<1x8xf32, #tpu.memory_space<vmem>>) attributes {dimension_semantics = [#tpu.dimension_semantics<parallel>], iteration_bounds = array<i64: 1>, scalar_prefetch = 0 : i64, scratch_operands = 0 : i64, tpu.core_type = #tpu.core_type<tc>, window_params = [{transform_indices = @transform_0, window_bounds = array<i64: 5, 8>}, {pipeline_mode = #tpu.pipeline_mode<synchronous>, transform_indices = @transform_1, window_bounds = array<i64: 5, 5>}, {pipeline_mode = #tpu.pipeline_mode<synchronous>, transform_indices = @transform_2, window_bounds = array<i64: 5, 1>}, {pipeline_mode = #tpu.pipeline_mode<synchronous>, transform_indices = @transform_3, window_bounds = array<i64: 5, 1>}, {pipeline_mode = #tpu.pipeline_mode<synchronous>, transform_indices = @transform_4, window_bounds = array<i64: 1, 1>}, {transform_indices = @transform_5, window_bounds = array<i64: 1, 8>}]} {
    %c0 = arith.constant 0 : index
    %c0_0 = arith.constant 0 : index
    %0 = vector.load %arg1[%c0, %c0_0] : memref<5x8xf32, #tpu.memory_space<vmem>>, vector<5x8xf32>
    %c0_1 = arith.constant 0 : index
    %c0_2 = arith.constant 0 : index
    %1 = vector.load %arg2[%c0_1, %c0_2] : memref<5x5xf32, #tpu.memory_space<vmem>>, vector<5x5xf32>
    %2 = vector.extract_strided_slice %1 {offsets = [0, 0], sizes = [5, 1], strides = [1, 1]} : vector<5x5xf32> to vector<5x1xf32>
    %3 = vector.extract_strided_slice %0 {offsets = [0, 0], sizes = [1, 8], strides = [1, 1]} : vector<5x8xf32> to vector<1x8xf32>
    %4 = vector.broadcast %2 : vector<5x1xf32> to vector<5x8xf32>
    %5 = vector.broadcast %3 : vector<1x8xf32> to vector<5x8xf32>
    %6 = arith.mulf %4, %5 : vector<5x8xf32>
    %7 = vector.extract_strided_slice %1 {offsets = [0, 1], sizes = [5, 1], strides = [1, 1]} : vector<5x5xf32> to vector<5x1xf32>
    %8 = vector.extract_strided_slice %0 {offsets = [1, 0], sizes = [1, 8], strides = [1, 1]} : vector<5x8xf32> to vector<1x8xf32>
    %9 = vector.broadcast %7 : vector<5x1xf32> to vector<5x8xf32>
    %10 = vector.broadcast %8 : vector<1x8xf32> to vector<5x8xf32>
    %11 = arith.mulf %9, %10 : vector<5x8xf32>
    %12 = arith.addf %6, %11 : vector<5x8xf32>
    %13 = vector.extract_strided_slice %1 {offsets = [0, 2], sizes = [5, 1], strides = [1, 1]} : vector<5x5xf32> to vector<5x1xf32>
    %14 = vector.extract_strided_slice %0 {offsets = [2, 0], sizes = [1, 8], strides = [1, 1]} : vector<5x8xf32> to vector<1x8xf32>
    %15 = vector.broadcast %13 : vector<5x1xf32> to vector<5x8xf32>
    %16 = vector.broadcast %14 : vector<1x8xf32> to vector<5x8xf32>
    %17 = arith.mulf %15, %16 : vector<5x8xf32>
    %18 = arith.addf %12, %17 : vector<5x8xf32>
    %19 = vector.extract_strided_slice %1 {offsets = [0, 3], sizes = [5, 1], strides = [1, 1]} : vector<5x5xf32> to vector<5x1xf32>
    %20 = vector.extract_strided_slice %0 {offsets = [3, 0], sizes = [1, 8], strides = [1, 1]} : vector<5x8xf32> to vector<1x8xf32>
    %21 = vector.broadcast %19 : vector<5x1xf32> to vector<5x8xf32>
    %22 = vector.broadcast %20 : vector<1x8xf32> to vector<5x8xf32>
    %23 = arith.mulf %21, %22 : vector<5x8xf32>
    %24 = arith.addf %18, %23 : vector<5x8xf32>
    %25 = vector.extract_strided_slice %1 {offsets = [0, 4], sizes = [5, 1], strides = [1, 1]} : vector<5x5xf32> to vector<5x1xf32>
    %26 = vector.extract_strided_slice %0 {offsets = [4, 0], sizes = [1, 8], strides = [1, 1]} : vector<5x8xf32> to vector<1x8xf32>
    %27 = vector.broadcast %25 : vector<5x1xf32> to vector<5x8xf32>
    %28 = vector.broadcast %26 : vector<1x8xf32> to vector<5x8xf32>
    %29 = arith.mulf %27, %28 : vector<5x8xf32>
    %30 = arith.addf %24, %29 : vector<5x8xf32>
    %c0_3 = arith.constant 0 : index
    %c0_4 = arith.constant 0 : index
    %31 = vector.load %arg3[%c0_3, %c0_4] : memref<5x1xf32, #tpu.memory_space<vmem>>, vector<5x1xf32>
    %32 = vector.broadcast %31 : vector<5x1xf32> to vector<5x8xf32>
    %33 = arith.addf %30, %32 : vector<5x8xf32>
    %cst = arith.constant 0.000000e+00 : f32
    %34 = vector.broadcast %cst : f32 to vector<5x8xf32>
    %35 = arith.maximumf %33, %34 : vector<5x8xf32>
    %c0_5 = arith.constant 0 : index
    %c0_6 = arith.constant 0 : index
    %36 = vector.load %arg4[%c0_5, %c0_6] : memref<5x1xf32, #tpu.memory_space<vmem>>, vector<5x1xf32>
    %37 = vector.broadcast %36 : vector<5x1xf32> to vector<5x8xf32>
    %38 = arith.mulf %35, %37 : vector<5x8xf32>
    %cst_7 = arith.constant dense<0.000000e+00> : vector<8xf32>
    %39 = vector.multi_reduction <add>, %38, %cst_7 [0] : vector<5x8xf32> to vector<8xf32>
    %40 = vector.shape_cast %39 : vector<8xf32> to vector<1x8xf32>
    %c0_8 = arith.constant 0 : index
    %c0_9 = arith.constant 0 : index
    %41 = vector.load %arg5[%c0_8, %c0_9] : memref<1x1xf32, #tpu.memory_space<vmem>>, vector<1x1xf32>
    %42 = vector.broadcast %41 : vector<1x1xf32> to vector<1x8xf32>
    %43 = arith.addf %40, %42 : vector<1x8xf32>
    %c0_10 = arith.constant 0 : index
    %c0_11 = arith.constant 0 : index
    %44 = vector.load %arg6[%c0_10, %c0_11] : memref<1x8xf32, #tpu.memory_space<vmem>>, vector<1x8xf32>
    tpu.vector_store %arg6[%c0_10, %c0_11], %43 {strides = array<i32>} : memref<1x8xf32, #tpu.memory_space<vmem>>, vector<1x8xf32>,
    return
  }
  func.func @transform_0(%arg0: i32) -> (i32, i32) {
    %c0_i32 = arith.constant 0 : i32
    %c0_i32_0 = arith.constant 0 : i32
    return %c0_i32, %arg0 : i32, i32
  }
  func.func @transform_1(%arg0: i32) -> (i32, i32) {
    %c0_i32 = arith.constant 0 : i32
    %c0_i32_0 = arith.constant 0 : i32
    %c0_i32_1 = arith.constant 0 : i32
    return %c0_i32, %c0_i32_0 : i32, i32
  }
  func.func @transform_2(%arg0: i32) -> (i32, i32) {
    %c0_i32 = arith.constant 0 : i32
    %c0_i32_0 = arith.constant 0 : i32
    %c0_i32_1 = arith.constant 0 : i32
    return %c0_i32, %c0_i32_0 : i32, i32
  }
  func.func @transform_3(%arg0: i32) -> (i32, i32) {
    %c0_i32 = arith.constant 0 : i32
    %c0_i32_0 = arith.constant 0 : i32
    %c0_i32_1 = arith.constant 0 : i32
    return %c0_i32, %c0_i32_0 : i32, i32
  }
  func.func @transform_4(%arg0: i32) -> (i32, i32) {
    %c0_i32 = arith.constant 0 : i32
    %c0_i32_0 = arith.constant 0 : i32
    %c0_i32_1 = arith.constant 0 : i32
    return %c0_i32, %c0_i32_0 : i32, i32
  }
  func.func @transform_5(%arg0: i32) -> (i32, i32) {
    %c0_i32 = arith.constant 0 : i32
    %c0_i32_0 = arith.constant 0 : i32
    return %c0_i32, %arg0 : i32, i32
  }
}

</mosaic_0001>

<llo_original>
// kernel: tpu_custom_call.1
$region0: #{tpu_custom_call.1}
  #allocation0 [shape = 'u32[]', space=smem, size = 0x4, offset = 0x4, fixed_abs, tag = 'smem constant byte address 0x4 - core index']
  #allocation1 [shape = 'u32[144,128]{1,0:T(1,128)}', space=vmem, size = 0x12000, scoped, tag = 'internal scratch']
  #allocation2 [shape = 'f32[1,1]{1,0:T(1,128)S(1)}', space=vmem, size = 0x200, scoped, tag = 'scoped memory for tpu_custom_call.1']
  %s0 = inlined_call_operand.vmem [shape: f32[5,8], index: 0, kind: input, shape index: {}]
  %s1 = inlined_call_operand.vmem [shape: f32[5,5], index: 1, kind: input, shape index: {}]
  %s2 = inlined_call_operand.vmem [shape: f32[5,1], index: 2, kind: input, shape index: {}]
  %s3 = inlined_call_operand.vmem [shape: f32[5,1], index: 3, kind: input, shape index: {}]
  %s4 = inlined_call_operand.<no memory space> [shape: f32[1,1], index: 4, kind: input, shape index: {}]
  %s5 = inlined_call_operand.hbm [shape: f32[1,8], index: 5, kind: output, shape index: {}]
  %s6 = sld [smem:[#allocation0]]
  $region30: #{tpu_custom_call.1} parent=0
    _
  %s8 = ssub.s32 1, %s6
  %s9 = scalar_select 0, %s8, %s6
  %v10 = vstv %s4
  %11 = vst [vmem:[#allocation2] sm:$0x1] %v10
  $region1: #{tpu_custom_call.1} parent=0
    #allocation3 [shape = 'u8[512]{0}', space=vmem, size = 0x400, scoped, tag = 'output window, operand 0, single buffered']
    #allocation4 [shape = 's32[1]{0}', space=sflag, size = 0x4, scoped, tag = 'scoped memory for tpu_custom_call.1']
    %12 = vsyncpa [#allocation4], 0
    // Predicated region
    $region2: #{tpu_custom_call.1} parent=1 // pred_check
      _
    $region3: #{tpu_custom_call.1} parent=1 // pred_check_branch
      %14 = sbr.rel (0) target = $region5
    $region4: #{tpu_custom_call.1} parent=1 // pred_region
      _
    $region5: #{tpu_custom_call.1} parent=1 // pred_fallthru
      _
    // Predicated region
    $region6: #{tpu_custom_call.1} parent=1 // pred_check
      _
    $region7: #{tpu_custom_call.1} parent=1 // pred_check_branch
      %16 = sbr.rel (0) target = $region9
    $region8: #{tpu_custom_call.1} parent=1 // pred_region
      _
    $region9: #{tpu_custom_call.1} parent=1 // pred_fallthru
      _
    // Predicated region
    $region10: #{tpu_custom_call.1} parent=1 // pred_check
      _
    $region11: #{tpu_custom_call.1} parent=1 // pred_check_branch
      %18 = sbr.rel (0) target = $region13
    $region12: #{tpu_custom_call.1} parent=1 // pred_region
      _
    $region13: #{tpu_custom_call.1} parent=1 // pred_fallthru
      _
    // Predicated region
    $region14: #{tpu_custom_call.1} parent=1 // pred_check
      _
    $region15: #{tpu_custom_call.1} parent=1 // pred_check_branch
      %20 = sbr.rel (0) target = $region17
    $region16: #{tpu_custom_call.1} parent=1 // pred_region
      _
    $region17: #{tpu_custom_call.1} parent=1 // pred_fallthru
      _
    // Predicated region
    $region18: #{tpu_custom_call.1} parent=1 // pred_check
      _
    $region19: #{tpu_custom_call.1} parent=1 // pred_check_branch
      %22 = sbr.rel (0) target = $region21
    $region20: #{tpu_custom_call.1} parent=1 // pred_region
      _
    $region21: #{tpu_custom_call.1} parent=1 // pred_fallthru
      _
    %v23 = vld [vmem:[%s0] sm:$0x1f]
    %v24 = vld [vmem:[%s1] sm:$0x1f]
    %26 = vset.pattern.permute.xlu0 0
    %27 = vperm.xlu0 %26, %v24
    %v28 = vpop.permute.xlu0 %27
    %v30 = vlaneseq
    %v31 = vshrl.u32 %v30, 7
    %v32 = vsub.s32 0, %v31
    %v33 = vrot.slane %v23, %v32
    %v34 = vmul.f32 %v28, %v33
    %35 = vset.pattern.permute.xlu0 1
    %36 = vperm.xlu0 %35, %v24
    %v37 = vpop.permute.xlu0 %36
    %v39 = vlaneseq
    %v40 = vshrl.u32 %v39, 7
    %v41 = vsub.s32 1, %v40
    %v42 = vrot.slane %v23, %v41
    %v43 = vmul.f32 %v37, %v42
    %v44 = vadd.f32 %v34, %v43
    %45 = vset.pattern.permute.xlu0 2
    %46 = vperm.xlu0 %45, %v24
    %v47 = vpop.permute.xlu0 %46
    %v49 = vlaneseq
    %v50 = vshrl.u32 %v49, 7
    %v51 = vsub.s32 2, %v50
    %v52 = vrot.slane %v23, %v51
    %v53 = vmul.f32 %v47, %v52
    %v54 = vadd.f32 %v44, %v53
    %55 = vset.pattern.permute.xlu0 3
    %56 = vperm.xlu0 %55, %v24
    %v57 = vpop.permute.xlu0 %56
    %v59 = vlaneseq
    %v60 = vshrl.u32 %v59, 7
    %v61 = vsub.s32 3, %v60
    %v62 = vrot.slane %v23, %v61
    %v63 = vmul.f32 %v57, %v62
    %v64 = vadd.f32 %v54, %v63
    %65 = vset.pattern.permute.xlu0 4
    %66 = vperm.xlu0 %65, %v24
    %v67 = vpop.permute.xlu0 %66
    %v69 = vlaneseq
    %v70 = vshrl.u32 %v69, 7
    %v71 = vsub.s32 4, %v70
    %v72 = vrot.slane %v23, %v71
    %v73 = vmul.f32 %v67, %v72
    %v74 = vadd.f32 %v64, %v73
    %v75 = vld [vmem:[%s2] sm:$0x1f]
    %77 = vset.pattern.permute.xlu0 0
    %78 = vperm.xlu0 %77, %v75
    %v79 = vpop.permute.xlu0 %78
    %v81 = vadd.f32 %v74, %v79
    %v82 = vmax.f32 %v81, 0.0
    %v83 = vld [vmem:[%s3] sm:$0x1f]
    %85 = vset.pattern.permute.xlu0 0
    %86 = vperm.xlu0 %85, %v83
    %v87 = vpop.permute.xlu0 %86
    %v89 = vmul.f32 %v82, %v87
    %vm90 = vcmask 61440
    %v91 = vsel %vm90, %v89, 0.0
    %v92 = vrot.slane %v91, 4
    %v93 = vadd.f32 %v91, %v92
    %v94 = vrot.slane %v93, 2
    %v95 = vadd.f32 %v93, %v94
    %v96 = vrot.slane %v95, 1
    %v97 = vadd.f32 %v95, %v96
    %v98 = vld [vmem:[#allocation2] sm:$0x1]
    %100 = vset.pattern.permute.xlu0 0
    %101 = vperm.xlu0 %100, %v98
    %v102 = vpop.permute.xlu0 %101
    %v104 = vlaneseq
    %v105 = vshrl.u32 %v104, 7
    %v106 = vsub.s32 0, %v105
    %v107 = vrot.slane %v102, %v106
    %v108 = vadd.f32 %v97, %v107
    %vm109 = vcmask 57344
    %110 = vst.msk [vmem:[#allocation3] sm:$0x1] %vm109, %v108
    // Predicated region
    $region22: #{tpu_custom_call.1} parent=1 // pred_check
      _
    $region23: #{tpu_custom_call.1} parent=1 // pred_check_branch
      %112 = sbr.rel (0) target = $region25
    $region24: #{tpu_custom_call.1} parent=1 // pred_region
      %s114 = ssub.s32 16, 16
      %115 = vsyncadd [#allocation4], %s114
      %s117 = sshll.u32 [#allocation3], 4
      %s118 = int_to_ptr.vmem [resolvable:$true] %s117
      %120 = dma.vmem_to_hbm [thread:$0]  %s118, 16, %s5, [#allocation4]
    $region25: #{tpu_custom_call.1} parent=1 // pred_fallthru
      _
    // Predicated region
    $region26: #{tpu_custom_call.1} parent=1 // pred_check
      _
    $region27: #{tpu_custom_call.1} parent=1 // pred_check_branch
      %122 = sbr.rel (0) target = $region29
    $region28: #{tpu_custom_call.1} parent=1 // pred_region
      %123 = dma.done [#allocation4], 16
    $region29: #{tpu_custom_call.1} parent=1 // pred_fallthru
      _
    %124 = vsyncpa [#allocation4], 1

</llo_original>
